<compile_context>
chip_gen: v5e
topology: v5e:2x2
jax: 0.10.0
libtpu: 0.0.40
codegen_flags: <defaults>
</compile_context>

<pallas_src>
import jax
import jax.numpy as jnp
from jax.experimental import pallas as pl
from jax.experimental.pallas import tpu as pltpu


def _multispike_att_kernel(x_ref, o_ref):
    # floor(clip(4x, 0, 4) + 0.5) / 2 ; math in f32, storage in caller's dtype.
    # Note: bf16 inputs exactly on the 0.125-spaced decision thresholds may
    # round differently than an f32 reference (fine for a spike quantizer).
    x = x_ref[...].astype(jnp.float32)
    spikes = jnp.floor(jnp.clip(4.0 * x, 0.0, 4.0) + 0.5)
    o_ref[...] = (spikes * 0.5).astype(o_ref.dtype)


def _target_block_bytes():
    """Per-TPU-generation target size (bytes) for one streamed block."""
    try:
        kind = jax.devices()[0].device_kind.lower()
    except Exception:
        kind = ""
    if "v6" in kind:
        return 4 << 20   # v6e: 16 MiB double-buffered in+out fits 32 MiB scoped default
    if "v7" in kind or "7x" in kind:
        return 6 << 20   # v7x: 24 MiB double-buffered, well under 64 MiB physical VMEM
    return 2 << 20       # v5e / older / unknown: fits the 16 MiB scoped-VMEM default


def multispike_att(x, *, block_rows=None, donate=False):
    """Applies Multispike_att elementwise: floor(clamp(4x, 0, 4) + 0.5) / 2.

    Accepts any shape/dtype.  `donate=True` aliases the input buffer with the
    output; this only saves the allocation if the caller actually donates the
    buffer at the jit boundary (donate_argnums) -- otherwise XLA inserts a
    defensive copy.  Results are identical either way (aliasing saves an
    allocation, not HBM read/write traffic).
    """
    orig_shape = x.shape
    dtype = x.dtype
    n = x.size
    if n == 0:
        return x

    # Largest lane-dense column width that makes the flatten/reshape zero-copy.
    cols = next((c for c in (1024, 512, 256, 128) if n % c == 0), None)
    if cols is None:
        # n not a multiple of 128 (essentially never for transformer
        # activations).  A single fused XLA elementwise pass is already
        # HBM-bandwidth optimal; routing through the kernel would need a pad
        # or slice+concat round trip (~3x HBM traffic), so don't.
        # TODO(synk): in-kernel ragged tail via manual DMA if this path ever matters.
        xf = x.astype(jnp.float32)
        return (jnp.floor(jnp.clip(4.0 * xf, 0.0, 4.0) + 0.5) * 0.5).astype(dtype)

    rows = n // cols
    x2d = x.reshape(rows, cols)

    itemsize = jnp.dtype(dtype).itemsize
    # Sublane packing granularity: 8 rows (32-bit), 16 (bf16), 32 (int8/fp8).
    row_align = 8 * max(1, 4 // itemsize)

    if block_rows is None:
        block_rows = max(
            row_align,
            (_target_block_bytes() // (cols * itemsize)) // row_align * row_align,
        )

    if rows <= block_rows:
        tr = rows                                    # single block == full array dims
    else:
        tr = max(row_align, (block_rows // row_align) * row_align)
    grid = (pl.cdiv(rows, tr),)

    block_bytes = tr * cols * itemsize
    # in + out, each double-buffered, plus headroom; capped at v7x's 64 MiB VMEM.
    vmem_limit = int(min(64 << 20, max(16 << 20, 4 * block_bytes + (8 << 20))))

    cost = pl.CostEstimate(
        flops=6 * n,
        transcendentals=0,
        bytes_accessed=2 * n * itemsize,
    )

    out2d = pl.pallas_call(
        _multispike_att_kernel,
        out_shape=jax.ShapeDtypeStruct((rows, cols), dtype),
        grid_spec=pltpu.PrefetchScalarGridSpec(
            num_scalar_prefetch=0,
            grid=grid,
            in_specs=[pl.BlockSpec((tr, cols), lambda i: (i, 0))],
            out_specs=pl.BlockSpec((tr, cols), lambda i: (i, 0)),
        ),
        compiler_params=pltpu.CompilerParams(
            # v7x note: this axis is embarrassingly parallel; if a profile shows
            # only one TensorCore streaming, switch to pltpu.CORE_PARALLEL here.
            dimension_semantics=("parallel",),
            vmem_limit_bytes=vmem_limit,
        ),
        cost_estimate=cost,
        # Opt-in buffer aliasing when the caller no longer needs x (see docstring).
        input_output_aliases=({0: 0} if donate else {}),
    )(x2d)

    return out2d.reshape(orig_shape)


def _reference(x):
    # Pure-JAX reference mirroring the PyTorch forward (math in f32).
    xf = x.astype(jnp.float32)
    return (jnp.floor(jnp.clip(4.0 * xf, 0.0, 4.0) + 0.5) / 2.0).astype(x.dtype)


if __name__ == "__main__":
    key = jax.random.PRNGKey(0)
    # Shape consistent with attention-style activations (NCHW-ish synthetic input).
    x = jax.random.normal(key, (2, 4, 16, 16), dtype=jnp.float32) * 1.5

    y = jax.block_until_ready(multispike_att(x))
    assert y.shape == x.shape and y.dtype == x.dtype
    assert jnp.array_equal(y, _reference(x)), "f32 mismatch vs reference"

    # bf16 path (native dtype end-to-end, dtype-aware tiling).
    xb = x.astype(jnp.bfloat16)
    yb = jax.block_until_ready(multispike_att(xb))
    assert yb.shape == xb.shape and yb.dtype == jnp.bfloat16
    assert jnp.array_equal(yb, _reference(xb)), "bf16 mismatch vs reference"

    # Flat size divisible by 256 but not 512 (exercises the cols=256 path,
    # no pad/slice round trip).
    x2 = jax.random.normal(jax.random.PRNGKey(1), (2, 3, 128), dtype=jnp.float32)
    y2 = jax.block_until_ready(multispike_att(x2))
    assert jnp.array_equal(y2, _reference(x2)), "cols=256 mismatch vs reference"

    print("KERNEL_OK")
</pallas_src>

<mosaic_0001>
module attributes {stable_mosaic.version = 11 : i64} {
  func.func @_multispike_att_kernel(%arg0: i32, %arg1: memref<2x1024xf32, #tpu.memory_space<vmem>>, %arg2: memref<2x1024xf32, #tpu.memory_space<vmem>>) attributes {dimension_semantics = [#tpu.dimension_semantics<parallel>], iteration_bounds = array<i64: 1>, scalar_prefetch = 0 : i64, scratch_operands = 0 : i64, tpu.core_type = #tpu.core_type<tc>, window_params = [{transform_indices = @transform_0, window_bounds = array<i64: 2, 1024>}, {transform_indices = @transform_1, window_bounds = array<i64: 2, 1024>}]} {
    %c0 = arith.constant 0 : index
    %c0_0 = arith.constant 0 : index
    %0 = vector.load %arg1[%c0, %c0_0] : memref<2x1024xf32, #tpu.memory_space<vmem>>, vector<2x1024xf32>
    %cst = arith.constant 4.000000e+00 : f32
    %1 = vector.broadcast %cst : f32 to vector<2x1024xf32>
    %2 = arith.mulf %1, %0 : vector<2x1024xf32>
    %cst_1 = arith.constant 0.000000e+00 : f32
    %cst_2 = arith.constant 4.000000e+00 : f32
    %3 = vector.broadcast %cst_1 : f32 to vector<2x1024xf32>
    %4 = arith.maximumf %3, %2 : vector<2x1024xf32>
    %5 = vector.broadcast %cst_2 : f32 to vector<2x1024xf32>
    %6 = arith.minimumf %5, %4 : vector<2x1024xf32>
    %cst_3 = arith.constant 5.000000e-01 : f32
    %7 = vector.broadcast %cst_3 : f32 to vector<2x1024xf32>
    %8 = arith.addf %6, %7 : vector<2x1024xf32>
    %9 = math.floor %8 : vector<2x1024xf32>
    %cst_4 = arith.constant 5.000000e-01 : f32
    %10 = vector.broadcast %cst_4 : f32 to vector<2x1024xf32>
    %11 = arith.mulf %9, %10 : vector<2x1024xf32>
    %c0_5 = arith.constant 0 : index
    %c0_6 = arith.constant 0 : index
    %12 = vector.load %arg2[%c0_5, %c0_6] : memref<2x1024xf32, #tpu.memory_space<vmem>>, vector<2x1024xf32>
    tpu.vector_store %arg2[%c0_5, %c0_6], %11 {strides = array<i32>} : memref<2x1024xf32, #tpu.memory_space<vmem>>, vector<2x1024xf32>,
    return
  }
  func.func @transform_0(%arg0: i32) -> (i32, i32) {
    %c0_i32 = arith.constant 0 : i32
    %c0_i32_0 = arith.constant 0 : i32
    return %arg0, %c0_i32 : i32, i32
  }
  func.func @transform_1(%arg0: i32) -> (i32, i32) {
    %c0_i32 = arith.constant 0 : i32
    %c0_i32_0 = arith.constant 0 : i32
    return %arg0, %c0_i32 : i32, i32
  }
}

</mosaic_0001>

<llo_original>
// kernel: tpu_custom_call.1
$region0: #{tpu_custom_call.1}
  #allocation0 [shape = 'u32[]', space=smem, size = 0x4, offset = 0x4, fixed_abs, tag = 'smem constant byte address 0x4 - core index']
  #allocation1 [shape = 'u32[72,128]{1,0:T(1,128)}', space=vmem, size = 0x9000, scoped, tag = 'internal scratch']
  %s0 = inlined_call_operand.hbm [shape: f32[2,1024], index: 0, kind: input, shape index: {}]
  %s1 = inlined_call_operand.hbm [shape: f32[2,1024], index: 1, kind: output, shape index: {}]
  %s2 = sld [smem:[#allocation0]]
  $region18: #{tpu_custom_call.1} parent=0
    _
  %s4 = ssub.s32 1, %s2
  %s5 = scalar_select 0, %s4, %s2
  $region1: #{tpu_custom_call.1} parent=0
    #allocation2 [shape = 'u8[8192]{0}', space=vmem, size = 0x2000, scoped, tag = 'input window, operand 0, single buffered']
    #allocation3 [shape = 's32[1]{0}', space=sflag, size = 0x4, scoped, tag = 'scoped memory for tpu_custom_call.1']
    #allocation4 [shape = 's32[1]{0}', space=sflag, size = 0x4, scoped, tag = 'scoped memory for tpu_custom_call.1']
    #allocation5 [shape = 'u8[8192]{0}', space=vmem, size = 0x2000, scoped, tag = 'output window, operand 0, single buffered']
    %6 = vsyncpa [#allocation3], 0
    %7 = vsyncpa [#allocation4], 0
    // Predicated region
    $region2: #{tpu_custom_call.1} parent=1 // pred_check
      _
    $region3: #{tpu_custom_call.1} parent=1 // pred_check_branch
      %9 = sbr.rel (0) target = $region5
    $region4: #{tpu_custom_call.1} parent=1 // pred_region
      %11 = vsyncadd [#allocation3], 0
      %s13 = sshll.u32 %s0, 4
      %s14 = int_to_ptr.hbm [resolvable:$true] %s13
      %s15 = sshll.u32 [#allocation2], 4
      %s16 = int_to_ptr.vmem [resolvable:$true] %s15
      %18 = dma.hbm_to_vmem [thread:$0]  %s14, 256, %s16, [#allocation3]
    $region5: #{tpu_custom_call.1} parent=1 // pred_fallthru
      _
    // Predicated region
    $region6: #{tpu_custom_call.1} parent=1 // pred_check
      _
    $region7: #{tpu_custom_call.1} parent=1 // pred_check_branch
      %20 = sbr.rel (0) target = $region9
    $region8: #{tpu_custom_call.1} parent=1 // pred_region
      %22 = dma.done [#allocation3], 256
    $region9: #{tpu_custom_call.1} parent=1 // pred_fallthru
      _
    %v23 = vld [vmem:[#allocation2] sm:$0xff]
    %v24 = vld [vmem:[#allocation2 + $0x8] sm:$0xff]
    %v25 = vmul.f32 %v23, 4.0
    %v26 = vmul.f32 %v24, 4.0
    %v27 = vmax.f32 %v25, 0.0
    %v28 = vmax.f32 %v26, 0.0
    %v29 = vmin.f32 %v27, 4.0
    %v30 = vmin.f32 %v28, 4.0
    %v31 = vadd.f32 %v29, 0.5
    %v32 = vadd.f32 %v30, 0.5
    %v33 = vfloor.f32 %v31
    %v34 = vfloor.f32 %v32
    %v35 = vmul.f32 %v33, 0.5
    %v36 = vmul.f32 %v34, 0.5
    %37 = vst [vmem:[#allocation5] sm:$0xff] %v35
    %38 = vst [vmem:[#allocation5 + $0x8] sm:$0xff] %v36
    // Predicated region
    $region10: #{tpu_custom_call.1} parent=1 // pred_check
      _
    $region11: #{tpu_custom_call.1} parent=1 // pred_check_branch
      %40 = sbr.rel (0) target = $region13
    $region12: #{tpu_custom_call.1} parent=1 // pred_region
      %42 = vsyncadd [#allocation4], 0
      %s44 = sshll.u32 [#allocation5], 4
      %s45 = int_to_ptr.vmem [resolvable:$true] %s44
      %s46 = sshll.u32 %s1, 4
      %s47 = int_to_ptr.hbm [resolvable:$true] %s46
      %49 = dma.vmem_to_hbm [thread:$0]  %s45, 256, %s47, [#allocation4]
    $region13: #{tpu_custom_call.1} parent=1 // pred_fallthru
      _
    // Predicated region
    $region14: #{tpu_custom_call.1} parent=1 // pred_check
      _
    $region15: #{tpu_custom_call.1} parent=1 // pred_check_branch
      %51 = sbr.rel (0) target = $region17
    $region16: #{tpu_custom_call.1} parent=1 // pred_region
      %53 = dma.done [#allocation4], 256
    $region17: #{tpu_custom_call.1} parent=1 // pred_fallthru
      _
    %54 = vsyncpa [#allocation3], 1
    %55 = vsyncpa [#allocation4], 1

</llo_original>
